<compile_context>
chip_gen: v5e
topology: v5e:2x2
jax: 0.10.0
libtpu: 0.0.40
codegen_flags: <defaults>
</compile_context>

<pallas_src>
import functools
from math import sqrt

import jax
import jax.numpy as jnp
from jax import lax
from jax.experimental import pallas as pl
from jax.experimental.pallas import tpu as pltpu


def _round_up(n, m):
    return ((n + m - 1) // m) * m


def block_kernel(x_ref, halo_ref, w_ref, b_ref, o_ref, x3_ref, *,
                 eps: float, cout_true: int, mm_dtype):
    # x_ref:    (1, Cin_pad, TL)    current sequence tile (channels on sublanes, L on lanes)
    # halo_ref: (1, 1, Cin_pad, 2)  [:,0] = column just left of the tile, [:,1] = just right
    # w_ref:    (Cout_pad, 3*Cin_pad) fused conv weight, K blocks ordered [k=0 | k=1 | k=2]
    # b_ref:    (Cout_pad, 1)
    # o_ref:    (1, Cout_pad, TL)
    # x3_ref:   (3*Cin_pad, TL)     persistent VMEM scratch for the fused-K operand
    cin = x_ref.shape[1]
    tl = x_ref.shape[2]

    x = x_ref[0]                                   # (Cin_pad, TL) f32
    halo = halo_ref[0, 0]                          # (Cin_pad, 2)
    left = halo[:, 0:1]                            # x[:, tile_start - 1] (zero at seq start)
    right = halo[:, 1:2]                           # x[:, tile_end]       (zero at seq end)

    # Shifted views via XLU roll; only the boundary lane is patched from the halo.
    lane = lax.broadcasted_iota(jnp.int32, (cin, tl), 1)
    x_prev = jnp.where(lane == 0, left, pltpu.roll(x, 1, axis=1))          # x[:, l-1]
    x_next = jnp.where(lane == tl - 1, right, pltpu.roll(x, tl - 1, axis=1))  # x[:, l+1]

    # Write the three K-blocks straight into the persistent scratch (no concat chain).
    x3_ref[pl.ds(0, cin), :] = x_prev.astype(mm_dtype)
    x3_ref[pl.ds(cin, cin), :] = x.astype(mm_dtype)
    x3_ref[pl.ds(2 * cin, cin), :] = x_next.astype(mm_dtype)

    # Conv1d(k=3, pad=1) as one fused MXU matmul with K = 3*Cin_pad, f32 accumulation.
    prec = (lax.Precision.HIGHEST
            if jnp.dtype(mm_dtype) == jnp.dtype(jnp.float32)
            else lax.Precision.DEFAULT)
    y = jnp.dot(w_ref[...], x3_ref[...],
                preferred_element_type=jnp.float32, precision=prec)        # (Cout_pad, TL)
    y = y + b_ref[...]

    # PixelNorm over channels: F.normalize(y, dim=channels, eps) * sqrt(Cout_true)
    #   == y * rsqrt(max(sum(y^2), eps^2)) * sqrt(Cout_true).
    # Padded output channels are exactly zero (zero weight rows + zero bias), so the
    # channel reduction is unchanged by padding.
    ss = jnp.sum(y * y, axis=0, keepdims=True)                             # (1, TL)
    inv = lax.rsqrt(jnp.maximum(ss, jnp.float32(eps * eps))) * jnp.float32(sqrt(cout_true))
    y = y * inv

    # SiLU; Dropout(p=0.0) == identity.
    y = y * jax.nn.sigmoid(y)
    o_ref[0] = y.astype(o_ref.dtype)


def _choose_tile(L, per_lane_bytes, fixed_bytes, budget_bytes, max_tl):
    """Pick an L-tile size TL and the padded length.

    TL is the largest power-of-two multiple of 128 (capped at max_tl) whose per-step
    working set fits the VMEM budget; short sequences use one full-extent tile.
    """
    if L <= max_tl and L <= 256:
        return L, L
    tl = 128
    while tl * 2 <= max_tl and per_lane_bytes * (tl * 2) + fixed_bytes <= budget_bytes:
        tl *= 2
    if tl >= L:
        return L, L
    l_pad = int(pl.cdiv(L, tl)) * tl
    return tl, l_pad


def _vmem_budget_bytes():
    try:
        cap = int(getattr(pltpu.get_tpu_info(), "vmem_capacity_bytes", 0)) or (64 << 20)
    except Exception:
        cap = 64 << 20
    # ~75% of physical VMEM, capped at 100 MiB (v5e/v6e); bounded automatically on v7x.
    return min((cap * 3) // 4, 100 << 20)


def block_forward(x_ncl, weight, bias, *, eps=1e-4, matmul_dtype=jnp.float32,
                  max_tl=4096, vmem_budget_bytes=None):
    """x_ncl: (B, Cin, L) f32; weight: (Cout, Cin, 3); bias: (Cout,). Returns (B, Cout, L)."""
    B, Cin, L = x_ncl.shape
    Cout = weight.shape[0]
    mm_dtype = jnp.dtype(matmul_dtype)

    # Channel padding to the sublane multiple so K-block slabs / weight tiles stay aligned.
    sub = 16 if mm_dtype == jnp.dtype(jnp.bfloat16) else 8
    cin_p = _round_up(Cin, sub)
    cout_p = _round_up(Cout, sub)
    if cin_p != Cin:
        x_ncl = jnp.pad(x_ncl, ((0, 0), (0, cin_p - Cin), (0, 0)))
        weight = jnp.pad(weight, ((0, 0), (0, cin_p - Cin), (0, 0)))
    if cout_p != Cout:
        weight = jnp.pad(weight, ((0, cout_p - Cout), (0, 0), (0, 0)))
        bias = jnp.pad(bias, ((0, cout_p - Cout),))

    if vmem_budget_bytes is None:
        vmem_budget_bytes = _vmem_budget_bytes()

    # Per-step working set (bytes per lane of TL): double-buffered x and out, x3 scratch,
    # y temporaries; plus (double-buffered) weights + slack as fixed cost.
    mm_item = mm_dtype.itemsize
    per_lane = 2 * cin_p * 4 + 2 * cout_p * 4 + 3 * cin_p * mm_item + 2 * cout_p * 4
    fixed = 2 * (cout_p * 3 * cin_p * mm_item + cout_p * 4) + (2 << 20)

    tl, l_pad = _choose_tile(L, per_lane, fixed, vmem_budget_bytes, max_tl)
    nt = l_pad // tl

    x_p = x_ncl if l_pad == L else jnp.pad(x_ncl, ((0, 0), (0, 0), (0, l_pad - L)))

    # Per-tile halo columns via strided slices (no gather):
    #   left[t]  = x[:, :, t*tl - 1]  (zero for t == 0, matching the conv's left padding)
    #   right[t] = x[:, :, (t+1)*tl]  (zero for t == nt-1, matching the right padding)
    zero_col = jnp.zeros((B, cin_p, 1), x_p.dtype)
    if nt > 1:
        lefts = jnp.concatenate([zero_col, x_p[:, :, tl - 1:l_pad - 1:tl]], axis=2)
        rights = jnp.concatenate([x_p[:, :, tl::tl], zero_col], axis=2)
    else:
        lefts, rights = zero_col, zero_col
    halo = jnp.transpose(jnp.stack([lefts, rights], axis=-1), (2, 0, 1, 3))  # (nt,B,Cin_p,2)

    # Fused conv weight: (Cout_p, Cin_p, 3) -> (Cout_p, 3*Cin_p), K blocks ordered k=0,1,2
    # to match X3 = [x[l-1]; x[l]; x[l+1]].  Cast once here if running bf16 MXU operands.
    w3 = jnp.transpose(weight, (0, 2, 1)).reshape(cout_p, 3 * cin_p).astype(mm_dtype)
    b2 = bias.reshape(cout_p, 1).astype(jnp.float32)

    kernel = functools.partial(block_kernel, eps=eps, cout_true=Cout, mm_dtype=mm_dtype)

    def build_call(single_buffer_weights):
        if single_buffer_weights:
            # Grid-invariant operands: single-buffer to save VMEM (matters on v7x's 64 MiB).
            w_spec = pl.BlockSpec((cout_p, 3 * cin_p), lambda b, t: (0, 0),
                                  pipeline_mode=pl.Buffered(1))
            b_spec = pl.BlockSpec((cout_p, 1), lambda b, t: (0, 0),
                                  pipeline_mode=pl.Buffered(1))
        else:
            w_spec = pl.BlockSpec((cout_p, 3 * cin_p), lambda b, t: (0, 0))
            b_spec = pl.BlockSpec((cout_p, 1), lambda b, t: (0, 0))
        return pl.pallas_call(
            kernel,
            out_shape=jax.ShapeDtypeStruct((B, cout_p, l_pad), x_p.dtype),
            grid_spec=pltpu.PrefetchScalarGridSpec(
                num_scalar_prefetch=0,
                grid=(B, nt),
                in_specs=[
                    pl.BlockSpec((1, cin_p, tl), lambda b, t: (b, 0, t)),
                    pl.BlockSpec((1, 1, cin_p, 2), lambda b, t: (t, b, 0, 0)),
                    w_spec,
                    b_spec,
                ],
                out_specs=pl.BlockSpec((1, cout_p, tl), lambda b, t: (b, 0, t)),
                scratch_shapes=[pltpu.VMEM((3 * cin_p, tl), mm_dtype)],
            ),
            compiler_params=pltpu.CompilerParams(
                # Both axes independent -> megacore-shardable.  (On v7x, CORE_PARALLEL on
                # the B axis is a further option if plain "parallel" is not core-sharded.)
                dimension_semantics=("parallel", "parallel"),
                vmem_limit_bytes=int(vmem_budget_bytes),
            ),
        )

    try:
        out = build_call(True)(x_p, halo, w3, b2)
    except Exception:
        # Fallback if this jax build rejects pl.Buffered(1) for grid-invariant inputs.
        out = build_call(False)(x_p, halo, w3, b2)

    return out[:, :Cout, :L]


def block_reference(x_ncl, weight, bias, *, eps=1e-4):
    """Pure-JAX reference matching the PyTorch forward (mask=None, eval)."""
    Cout = weight.shape[0]
    y = lax.conv_general_dilated(
        x_ncl, weight, window_strides=(1,), padding=((1, 1),),
        dimension_numbers=("NCH", "OIH", "NCH"),
        precision=lax.Precision.HIGHEST)
    y = y + bias[None, :, None]
    norm = jnp.sqrt(jnp.sum(y * y, axis=1, keepdims=True))
    y = y / jnp.maximum(norm, eps) * sqrt(Cout)
    return y * jax.nn.sigmoid(y)


if __name__ == "__main__":
    key = jax.random.PRNGKey(0)
    kx, kw, kb = jax.random.split(key, 3)

    # Small test (single L tile, odd channel counts exercise the channel padding).
    B, C_IN, C_OUT, L = 2, 4, 8, 128
    x = jax.random.normal(kx, (B, C_IN, L), dtype=jnp.float32)
    weight = jax.random.normal(kw, (C_OUT, C_IN, 3), dtype=jnp.float32) * 0.2
    bias = jax.random.normal(kb, (C_OUT,), dtype=jnp.float32) * 0.1

    out = jax.block_until_ready(block_forward(x, weight, bias))
    ref = jax.block_until_ready(block_reference(x, weight, bias))
    assert out.shape == (B, C_OUT, L)
    assert jnp.allclose(out, ref, atol=1e-5, rtol=1e-5), "mismatch vs reference (small)"

    # Multi-tile test: exercises L tiling + roll/halo patching across tile boundaries.
    k2x, k2w, k2b = jax.random.split(jax.random.PRNGKey(1), 3)
    B2, CI2, CO2, L2 = 1, 8, 16, 512
    x2 = jax.random.normal(k2x, (B2, CI2, L2), dtype=jnp.float32)
    w2 = jax.random.normal(k2w, (CO2, CI2, 3), dtype=jnp.float32) * 0.2
    b2 = jax.random.normal(k2b, (CO2,), dtype=jnp.float32) * 0.1
    out2 = jax.block_until_ready(block_forward(x2, w2, b2, max_tl=128))
    ref2 = jax.block_until_ready(block_reference(x2, w2, b2))
    assert out2.shape == (B2, CO2, L2)
    assert jnp.allclose(out2, ref2, atol=1e-5, rtol=1e-5), "mismatch vs reference (tiled)"

    print("KERNEL_OK")
</pallas_src>

<mosaic_0001>
module attributes {stable_mosaic.version = 11 : i64} {
  func.func @block_kernel(%arg0: i32, %arg1: i32, %arg2: memref<1x8x128xf32, #tpu.memory_space<vmem>>, %arg3: memref<1x1x8x2xf32, #tpu.memory_space<vmem>>, %arg4: memref<8x24xf32, #tpu.memory_space<vmem>>, %arg5: memref<8x1xf32, #tpu.memory_space<vmem>>, %arg6: memref<1x8x128xf32, #tpu.memory_space<vmem>>, %arg7: memref<24x128xf32, #tpu.memory_space<vmem>>) attributes {dimension_semantics = [#tpu.dimension_semantics<parallel>, #tpu.dimension_semantics<parallel>], iteration_bounds = array<i64: 2, 1>, scalar_prefetch = 0 : i64, scratch_operands = 1 : i64, tpu.core_type = #tpu.core_type<tc>, window_params = [{transform_indices = @transform_0, window_bounds = array<i64: 1, 8, 128>}, {transform_indices = @transform_1, window_bounds = array<i64: 1, 1, 8, 2>}, {pipeline_mode = #tpu.pipeline_mode<synchronous>, transform_indices = @transform_2, window_bounds = array<i64: 8, 24>}, {pipeline_mode = #tpu.pipeline_mode<synchronous>, transform_indices = @transform_3, window_bounds = array<i64: 8, 1>}, {transform_indices = @transform_4, window_bounds = array<i64: 1, 8, 128>}]} {
    %c0 = arith.constant 0 : index
    %c0_0 = arith.constant 0 : index
    %c0_1 = arith.constant 0 : index
    %0 = vector.load %arg2[%c0, %c0_0, %c0_1] : memref<1x8x128xf32, #tpu.memory_space<vmem>>, vector<1x8x128xf32>
    %1 = vector.shape_cast %0 : vector<1x8x128xf32> to vector<8x128xf32>
    %c0_2 = arith.constant 0 : index
    %c0_3 = arith.constant 0 : index
    %c0_4 = arith.constant 0 : index
    %c0_5 = arith.constant 0 : index
    %2 = vector.load %arg3[%c0_2, %c0_3, %c0_4, %c0_5] : memref<1x1x8x2xf32, #tpu.memory_space<vmem>>, vector<1x1x8x2xf32>
    %3 = vector.shape_cast %2 : vector<1x1x8x2xf32> to vector<8x2xf32>
    %4 = vector.extract_strided_slice %3 {offsets = [0, 0], sizes = [8, 1], strides = [1, 1]} : vector<8x2xf32> to vector<8x1xf32>
    %5 = vector.extract_strided_slice %3 {offsets = [0, 1], sizes = [8, 1], strides = [1, 1]} : vector<8x2xf32> to vector<8x1xf32>
    %6 = tpu.iota {dimensions = array<i32: 1>} : vector<8x128xi32>
    %c0_i32 = arith.constant 0 : i32
    %7 = vector.broadcast %c0_i32 : i32 to vector<8x128xi32>
    %8 = arith.cmpi eq, %6, %7 : vector<8x128xi32>
    %c1_i32 = arith.constant 1 : i32
    %9 = tpu.dynamic_rotate %1 by %c1_i32 dim 1 : vector<8x128xf32>, i32 -> vector<8x128xf32>
    %10 = vector.shape_cast %4 : vector<8x1xf32> to vector<8x1xf32>
    %11 = vector.broadcast %10 : vector<8x1xf32> to vector<8x128xf32>
    %12 = arith.select %8, %11, %9 : vector<8x128xi1>, vector<8x128xf32>
    %c127_i32 = arith.constant 127 : i32
    %13 = vector.broadcast %c127_i32 : i32 to vector<8x128xi32>
    %14 = arith.cmpi eq, %6, %13 : vector<8x128xi32>
    %c127_i32_6 = arith.constant 127 : i32
    %15 = tpu.dynamic_rotate %1 by %c127_i32_6 dim 1 : vector<8x128xf32>, i32 -> vector<8x128xf32>
    %16 = vector.shape_cast %5 : vector<8x1xf32> to vector<8x1xf32>
    %17 = vector.broadcast %16 : vector<8x1xf32> to vector<8x128xf32>
    %18 = arith.select %14, %17, %15 : vector<8x128xi1>, vector<8x128xf32>
    %c0_7 = arith.constant 0 : index
    %c0_8 = arith.constant 0 : index
    %19 = vector.load %arg7[%c0_7, %c0_8] : memref<24x128xf32, #tpu.memory_space<vmem>>, vector<8x128xf32>
    tpu.vector_store %arg7[%c0_7, %c0_8], %12 {strides = array<i32>} : memref<24x128xf32, #tpu.memory_space<vmem>>, vector<8x128xf32>,
    %c8 = arith.constant 8 : index
    %c0_9 = arith.constant 0 : index
    %20 = vector.load %arg7[%c8, %c0_9] : memref<24x128xf32, #tpu.memory_space<vmem>>, vector<8x128xf32>
    tpu.vector_store %arg7[%c8, %c0_9], %1 {strides = array<i32>} : memref<24x128xf32, #tpu.memory_space<vmem>>, vector<8x128xf32>,
    %c16 = arith.constant 16 : index
    %c0_10 = arith.constant 0 : index
    %21 = vector.load %arg7[%c16, %c0_10] : memref<24x128xf32, #tpu.memory_space<vmem>>, vector<8x128xf32>
    tpu.vector_store %arg7[%c16, %c0_10], %18 {strides = array<i32>} : memref<24x128xf32, #tpu.memory_space<vmem>>, vector<8x128xf32>,
    %c0_11 = arith.constant 0 : index
    %c0_12 = arith.constant 0 : index
    %22 = vector.load %arg4[%c0_11, %c0_12] : memref<8x24xf32, #tpu.memory_space<vmem>>, vector<8x24xf32>
    %c0_13 = arith.constant 0 : index
    %c0_14 = arith.constant 0 : index
    %23 = vector.load %arg7[%c0_13, %c0_14] : memref<24x128xf32, #tpu.memory_space<vmem>>, vector<24x128xf32>
    %cst = arith.constant dense<0.000000e+00> : vector<8x128xf32>
    %24 = tpu.matmul %22, %23, %cst {dimension_numbers = #tpu.dot_dimension_numbers<[1], [0], [0], [1], [0, 0, 1, 1], [], []>, precision = #tpu.contract_precision<fp32>} : vector<8x24xf32>, vector<24x128xf32>, vector<8x128xf32> -> vector<8x128xf32>
    %c0_15 = arith.constant 0 : index
    %c0_16 = arith.constant 0 : index
    %25 = vector.load %arg5[%c0_15, %c0_16] : memref<8x1xf32, #tpu.memory_space<vmem>>, vector<8x1xf32>
    %26 = vector.broadcast %25 : vector<8x1xf32> to vector<8x128xf32>
    %27 = arith.addf %24, %26 : vector<8x128xf32>
    %28 = arith.mulf %27, %27 : vector<8x128xf32>
    %cst_17 = arith.constant dense<0.000000e+00> : vector<128xf32>
    %29 = vector.multi_reduction <add>, %28, %cst_17 [0] : vector<8x128xf32> to vector<128xf32>
    %30 = vector.shape_cast %29 : vector<128xf32> to vector<1x128xf32>
    %cst_18 = arith.constant 9.99999993E-9 : f32
    %31 = vector.broadcast %cst_18 : f32 to vector<1x128xf32>
    %32 = arith.maximumf %30, %31 : vector<1x128xf32>
    %33 = math.rsqrt %32 : vector<1x128xf32>
    %cst_19 = arith.constant 2.82842708 : f32
    %34 = vector.broadcast %cst_19 : f32 to vector<1x128xf32>
    %35 = arith.mulf %33, %34 : vector<1x128xf32>
    %36 = vector.broadcast %35 : vector<1x128xf32> to vector<8x128xf32>
    %37 = arith.mulf %27, %36 : vector<8x128xf32>
    %38 = arith.negf %37 : vector<8x128xf32>
    %39 = math.exp %38 : vector<8x128xf32>
    %cst_20 = arith.constant 1.000000e+00 : f32
    %40 = vector.broadcast %cst_20 : f32 to vector<8x128xf32>
    %41 = arith.addf %40, %39 : vector<8x128xf32>
    %42 = arith.divf %40, %41 : vector<8x128xf32>
    %43 = arith.mulf %37, %42 : vector<8x128xf32>
    %c0_21 = arith.constant 0 : index
    %c0_22 = arith.constant 0 : index
    %c0_23 = arith.constant 0 : index
    %44 = vector.load %arg6[%c0_21, %c0_22, %c0_23] : memref<1x8x128xf32, #tpu.memory_space<vmem>>, vector<1x8x128xf32>
    %45 = vector.shape_cast %44 : vector<1x8x128xf32> to vector<8x128xf32>
    %46 = vector.shape_cast %43 : vector<8x128xf32> to vector<1x8x128xf32>
    tpu.vector_store %arg6[%c0_21, %c0_22, %c0_23], %46 {strides = array<i32>} : memref<1x8x128xf32, #tpu.memory_space<vmem>>, vector<1x8x128xf32>,
    return
  }
  func.func @transform_0(%arg0: i32, %arg1: i32) -> (i32, i32, i32) {
    %c0_i32 = arith.constant 0 : i32
    %c0_i32_0 = arith.constant 0 : i32
    return %arg0, %c0_i32, %arg1 : i32, i32, i32
  }
  func.func @transform_1(%arg0: i32, %arg1: i32) -> (i32, i32, i32, i32) {
    %c0_i32 = arith.constant 0 : i32
    %c0_i32_0 = arith.constant 0 : i32
    %c0_i32_1 = arith.constant 0 : i32
    return %arg1, %arg0, %c0_i32, %c0_i32_0 : i32, i32, i32, i32
  }
  func.func @transform_2(%arg0: i32, %arg1: i32) -> (i32, i32) {
    %c0_i32 = arith.constant 0 : i32
    %c0_i32_0 = arith.constant 0 : i32
    %c0_i32_1 = arith.constant 0 : i32
    return %c0_i32, %c0_i32_0 : i32, i32
  }
  func.func @transform_3(%arg0: i32, %arg1: i32) -> (i32, i32) {
    %c0_i32 = arith.constant 0 : i32
    %c0_i32_0 = arith.constant 0 : i32
    %c0_i32_1 = arith.constant 0 : i32
    return %c0_i32, %c0_i32_0 : i32, i32
  }
  func.func @transform_4(%arg0: i32, %arg1: i32) -> (i32, i32, i32) {
    %c0_i32 = arith.constant 0 : i32
    %c0_i32_0 = arith.constant 0 : i32
    return %arg0, %c0_i32, %arg1 : i32, i32, i32
  }
}

module attributes {stable_mosaic.version = 11 : i64} {
  func.func @block_kernel(%arg0: i32, %arg1: i32, %arg2: memref<1x8x128xf32, #tpu.memory_space<vmem>>, %arg3: memref<1x1x8x2xf32, #tpu.memory_space<vmem>>, %arg4: memref<8x24xf32, #tpu.memory_space<vmem>>, %arg5: memref<8x1xf32, #tpu.memory_space<vmem>>, %arg6: memref<1x8x128xf32, #tpu.memory_space<vmem>>, %arg7: memref<24x128xf32, #tpu.memory_space<vmem>>) attributes {dimension_semantics = [#tpu.dimension_semantics<parallel>, #tpu.dimension_semantics<parallel>], iteration_bounds = array<i64: 2, 1>, scalar_prefetch = 0 : i64, scratch_operands = 1 : i64, tpu.core_type = #tpu.core_type<tc>, window_params = [{transform_indices = @transform_0, window_bounds = array<i64: 1, 8, 128>}, {transform_indices = @transform_1, window_bounds = array<i64: 1, 1, 8, 2>}, {pipeline_mode = #tpu.pipeline_mode<synchronous>, transform_indices = @transform_2, window_bounds = array<i64: 8, 24>}, {pipeline_mode = #tpu.pipeline_mode<synchronous>, transform_indices = @transform_3, window_bounds = array<i64: 8, 1>}, {transform_indices = @transform_4, window_bounds = array<i64: 1, 8, 128>}]} {
    %c0 = arith.constant 0 : index
    %c0_0 = arith.constant 0 : index
    %c0_1 = arith.constant 0 : index
    %0 = vector.load %arg2[%c0, %c0_0, %c0_1] : memref<1x8x128xf32, #tpu.memory_space<vmem>>, vector<1x8x128xf32>
    %1 = vector.shape_cast %0 : vector<1x8x128xf32> to vector<8x128xf32>
    %c0_2 = arith.constant 0 : index
    %c0_3 = arith.constant 0 : index
    %c0_4 = arith.constant 0 : index
    %c0_5 = arith.constant 0 : index
    %2 = vector.load %arg3[%c0_2, %c0_3, %c0_4, %c0_5] : memref<1x1x8x2xf32, #tpu.memory_space<vmem>>, vector<1x1x8x2xf32>
    %3 = vector.shape_cast %2 : vector<1x1x8x2xf32> to vector<8x2xf32>
    %4 = vector.extract_strided_slice %3 {offsets = [0, 0], sizes = [8, 1], strides = [1, 1]} : vector<8x2xf32> to vector<8x1xf32>
    %5 = vector.extract_strided_slice %3 {offsets = [0, 1], sizes = [8, 1], strides = [1, 1]} : vector<8x2xf32> to vector<8x1xf32>
    %6 = tpu.iota {dimensions = array<i32: 1>} : vector<8x128xi32>
    %c0_i32 = arith.constant 0 : i32
    %7 = vector.broadcast %c0_i32 : i32 to vector<8x128xi32>
    %8 = arith.cmpi eq, %6, %7 : vector<8x128xi32>
    %c1_i32 = arith.constant 1 : i32
    %9 = tpu.dynamic_rotate %1 by %c1_i32 dim 1 : vector<8x128xf32>, i32 -> vector<8x128xf32>
    %10 = vector.shape_cast %4 : vector<8x1xf32> to vector<8x1xf32>
    %11 = vector.broadcast %10 : vector<8x1xf32> to vector<8x128xf32>
    %12 = arith.select %8, %11, %9 : vector<8x128xi1>, vector<8x128xf32>
    %c127_i32 = arith.constant 127 : i32
    %13 = vector.broadcast %c127_i32 : i32 to vector<8x128xi32>
    %14 = arith.cmpi eq, %6, %13 : vector<8x128xi32>
    %c127_i32_6 = arith.constant 127 : i32
    %15 = tpu.dynamic_rotate %1 by %c127_i32_6 dim 1 : vector<8x128xf32>, i32 -> vector<8x128xf32>
    %16 = vector.shape_cast %5 : vector<8x1xf32> to vector<8x1xf32>
    %17 = vector.broadcast %16 : vector<8x1xf32> to vector<8x128xf32>
    %18 = arith.select %14, %17, %15 : vector<8x128xi1>, vector<8x128xf32>
    %c0_7 = arith.constant 0 : index
    %c0_8 = arith.constant 0 : index
    %19 = vector.load %arg7[%c0_7, %c0_8] : memref<24x128xf32, #tpu.memory_space<vmem>>, vector<8x128xf32>
    tpu.vector_store %arg7[%c0_7, %c0_8], %12 {strides = array<i32>} : memref<24x128xf32, #tpu.memory_space<vmem>>, vector<8x128xf32>,
    %c8 = arith.constant 8 : index
    %c0_9 = arith.constant 0 : index
    %20 = vector.load %arg7[%c8, %c0_9] : memref<24x128xf32, #tpu.memory_space<vmem>>, vector<8x128xf32>
    tpu.vector_store %arg7[%c8, %c0_9], %1 {strides = array<i32>} : memref<24x128xf32, #tpu.memory_space<vmem>>, vector<8x128xf32>,
    %c16 = arith.constant 16 : index
    %c0_10 = arith.constant 0 : index
    %21 = vector.load %arg7[%c16, %c0_10] : memref<24x128xf32, #tpu.memory_space<vmem>>, vector<8x128xf32>
    tpu.vector_store %arg7[%c16, %c0_10], %18 {strides = array<i32>} : memref<24x128xf32, #tpu.memory_space<vmem>>, vector<8x128xf32>,
    %c0_11 = arith.constant 0 : index
    %c0_12 = arith.constant 0 : index
    %22 = vector.load %arg4[%c0_11, %c0_12] : memref<8x24xf32, #tpu.memory_space<vmem>>, vector<8x24xf32>
    %c0_13 = arith.constant 0 : index
    %c0_14 = arith.constant 0 : index
    %23 = vector.load %arg7[%c0_13, %c0_14] : memref<24x128xf32, #tpu.memory_space<vmem>>, vector<24x128xf32>
    %cst = arith.constant dense<0.000000e+00> : vector<8x128xf32>
    %24 = tpu.matmul %22, %23, %cst {dimension_numbers = #tpu.dot_dimension_numbers<[1], [0], [0], [1], [0, 0, 1, 1], [], []>, precision = #tpu.contract_precision<fp32>} : vector<8x24xf32>, vector<24x128xf32>, vector<8x128xf32> -> vector<8x128xf32>
    %c0_15 = arith.constant 0 : index
    %c0_16 = arith.constant 0 : index
    %25 = vector.load %arg5[%c0_15, %c0_16] : memref<8x1xf32, #tpu.memory_space<vmem>>, vector<8x1xf32>
    %26 = vector.broadcast %25 : vector<8x1xf32> to vector<8x128xf32>
    %27 = arith.addf %24, %26 : vector<8x128xf32>
    %28 = arith.mulf %27, %27 : vector<8x128xf32>
    %cst_17 = arith.constant dense<0.000000e+00> : vector<128xf32>
    %29 = vector.multi_reduction <add>, %28, %cst_17 [0] : vector<8x128xf32> to vector<128xf32>
    %30 = vector.shape_cast %29 : vector<128xf32> to vector<1x128xf32>
    %cst_18 = arith.constant 9.99999993E-9 : f32
    %31 = vector.broadcast %cst_18 : f32 to vector<1x128xf32>
    %32 = arith.maximumf %30, %31 : vector<1x128xf32>
    %33 = math.rsqrt %32 : vector<1x128xf32>
    %cst_19 = arith.constant 2.82842708 : f32
    %34 = vector.broadcast %cst_19 : f32 to vector<1x128xf32>
    %35 = arith.mulf %33, %34 : vector<1x128xf32>
    %36 = vector.broadcast %35 : vector<1x128xf32> to vector<8x128xf32>
    %37 = arith.mulf %27, %36 : vector<8x128xf32>
    %38 = arith.negf %37 : vector<8x128xf32>
    %39 = math.exp %38 : vector<8x128xf32>
    %cst_20 = arith.constant 1.000000e+00 : f32
    %40 = vector.broadcast %cst_20 : f32 to vector<8x128xf32>
    %41 = arith.addf %40, %39 : vector<8x128xf32>
    %42 = arith.divf %40, %41 : vector<8x128xf32>
    %43 = arith.mulf %37, %42 : vector<8x128xf32>
    %c0_21 = arith.constant 0 : index
    %c0_22 = arith.constant 0 : index
    %c0_23 = arith.constant 0 : index
    %44 = vector.load %arg6[%c0_21, %c0_22, %c0_23] : memref<1x8x128xf32, #tpu.memory_space<vmem>>, vector<1x8x128xf32>
    %45 = vector.shape_cast %44 : vector<1x8x128xf32> to vector<8x128xf32>
    %46 = vector.shape_cast %43 : vector<8x128xf32> to vector<1x8x128xf32>
    tpu.vector_store %arg6[%c0_21, %c0_22, %c0_23], %46 {strides = array<i32>} : memref<1x8x128xf32, #tpu.memory_space<vmem>>, vector<1x8x128xf32>,
    return
  }
  func.func @transform_0(%arg0: i32, %arg1: i32) -> (i32, i32, i32) {
    %c0_i32 = arith.constant 0 : i32
    %c0_i32_0 = arith.constant 0 : i32
    return %arg0, %c0_i32, %arg1 : i32, i32, i32
  }
  func.func @transform_1(%arg0: i32, %arg1: i32) -> (i32, i32, i32, i32) {
    %c0_i32 = arith.constant 0 : i32
    %c0_i32_0 = arith.constant 0 : i32
    %c0_i32_1 = arith.constant 0 : i32
    return %arg1, %arg0, %c0_i32, %c0_i32_0 : i32, i32, i32, i32
  }
  func.func @transform_2(%arg0: i32, %arg1: i32) -> (i32, i32) {
    %c0_i32 = arith.constant 0 : i32
    %c0_i32_0 = arith.constant 0 : i32
    %c0_i32_1 = arith.constant 0 : i32
    return %c0_i32, %c0_i32_0 : i32, i32
  }
  func.func @transform_3(%arg0: i32, %arg1: i32) -> (i32, i32) {
    %c0_i32 = arith.constant 0 : i32
    %c0_i32_0 = arith.constant 0 : i32
    %c0_i32_1 = arith.constant 0 : i32
    return %c0_i32, %c0_i32_0 : i32, i32
  }
  func.func @transform_4(%arg0: i32, %arg1: i32) -> (i32, i32, i32) {
    %c0_i32 = arith.constant 0 : i32
    %c0_i32_0 = arith.constant 0 : i32
    return %arg0, %c0_i32, %arg1 : i32, i32, i32
  }
}

</mosaic_0001>

<llo_original>
// kernel: tpu_custom_call.1
$region0: #{tpu_custom_call.1}
  #allocation0 [shape = 'u32[]', space=smem, size = 0x4, offset = 0x4, fixed_abs, tag = 'smem constant byte address 0x4 - core index']
  #allocation1 [shape = 'u32[72,128]{1,0:T(1,128)}', space=vmem, size = 0x9000, scoped, tag = 'internal scratch']
  #allocation2 [shape = 'f32[24,128]{1,0:T(8,128)}', space=vmem, size = 0x3000, scoped, tag = 'scratch operand']
  %s0 = inlined_call_operand.vmem [shape: f32[2,8,128], index: 0, kind: input, shape index: {}]
  %s1 = inlined_call_operand.vmem [shape: f32[1,2,8,2], index: 1, kind: input, shape index: {}]
  %s2 = inlined_call_operand.vmem [shape: f32[8,24], index: 2, kind: input, shape index: {}]
  %s3 = inlined_call_operand.vmem [shape: f32[8,1], index: 3, kind: input, shape index: {}]
  %s4 = inlined_call_operand.hbm [shape: f32[2,8,128], index: 4, kind: output, shape index: {}]
  %s5 = sld [smem:[#allocation0]]
  $region49: #{tpu_custom_call.1} parent=0
    _
  %s7 = ssub.s32 1, %s5
  %s8 = scalar_select 0, %s7, %s5
  $region1: #{tpu_custom_call.1} parent=0
    #allocation3 [shape = 'u8[8192]{0}', space=vmem, size = 0x2000, scoped, tag = 'output window, operand 0']
    #allocation4 [shape = 's32[2]{0}', space=sflag, size = 0x8, scoped, tag = 'scoped memory for tpu_custom_call.1']
    %9 = vsyncpa [#allocation4], 0
    %s10 = scalar_lea.sflag [#allocation4], 1
    %11 = vsyncpa %s10, 0
    loop: start=0, step=1, limit=4
    $region2: #{tpu_custom_call.1} parent=1 // loop_pre_header
      _
    $region3: #{tpu_custom_call.1} parent=1 // loop_header
      %s13 = sphi 0, %s17
      %p14 = scmp.ge.s32.totalorder %s13, 4
      %s20 = sphi 0, %s32
      %s21 = sphi 0, %s28
      %s22 = sphi 0, %s20
      %s23 = sphi 0, %s21
      %s24 = sphi 0, %s22
      %s25 = sphi 0, %s23
      %s37 = sphi 0, %s39
      %s40 = sphi 0, %s37
      %s41 = sphi 0, %s40
      %s57 = sphi 0, %s41
      %s65 = sphi 0, %s67
      %s68 = sphi 0, %s65
      %s69 = sphi 0, %s68
      %s85 = sphi 0, %s69
      %s89 = sphi 0, %s89
      %s91 = sphi 0, %s89
      %s92 = sphi 0, %s91
      %s106 = sphi 0, %s92
      %s110 = sphi 0, %s110
      %s112 = sphi 0, %s110
      %s113 = sphi 0, %s112
      %s127 = sphi 0, %s113
      %s135 = sphi 0, %s137
      %s138 = sphi 0, %s135
      %s139 = sphi 0, %s138
      %s155 = sphi 0, %s139
    $region4: #{tpu_custom_call.1} parent=1 // loop_header_branch
      %16 = sbr.rel (%p14) target = $region8
    $region5: #{tpu_custom_call.1} parent=1 // loop_body
      %s18 = ssub.s32 %s13, 1
      %s19 = ssub.s32 %s13, 2
      %s26 = sadd.s32 1, %s21
      %p27 = scmp.ge.s32.totalorder %s26, 1
      %s28 = scalar_select %p27, 0, %s26
      %s29 = sadd.s32 1, %s20
      %s30 = scalar_select %p27, %s29, %s20
      %p31 = scmp.ge.s32.totalorder %s30, 2
      %s32 = scalar_select %p31, 0, %s30
      %s33 = ssub.s32 %s20, %s32
      %s34 = ssub.s32 %s21, %s28
      %s35 = sor.u32 %s33, %s34
      %p36 = scmp.eq.s32.totalorder %s35, 0
      %s38 = sadd.s32 %s37, 1
      %s39 = scalar_select %p36, %s37, %s38
      %p42 = pneg %p36
      %p43 = scmp.eq.s32.totalorder %s13, 1
      %p44 = por %p42, %p43
      %p45 = scmp.ne.s32.totalorder %s37, %s40
      %p46 = scmp.eq.s32.totalorder %s13, 0
      %p47 = por %p45, %p46
      %p48 = scmp.ne.s32.totalorder %s37, %s40
      %p49 = scmp.eq.s32.totalorder %s18, 1
      %p50 = por %p48, %p49
      %p51 = scmp.ne.s32.totalorder %s40, %s41
      %p52 = scmp.eq.s32.totalorder %s18, 0
      %p53 = por %p51, %p52
      %p54 = scmp.ne.s32.totalorder %s40, %s41
      %p55 = scmp.eq.s32.totalorder %s19, 1
      %p56 = por %p54, %p55
      %p58 = scmp.ne.s32.totalorder %s41, %s57
      %p59 = scmp.eq.s32.totalorder %s19, 0
      %p60 = por %p58, %p59
      %s61 = ssub.s32 %s21, %s28
      %s62 = ssub.s32 %s20, %s32
      %s63 = sor.u32 %s61, %s62
      %p64 = scmp.eq.s32.totalorder %s63, 0
      %s66 = sadd.s32 %s65, 1
      %s67 = scalar_select %p64, %s65, %s66
      %p70 = pneg %p64
      %p71 = scmp.eq.s32.totalorder %s13, 1
      %p72 = por %p70, %p71
      %p73 = scmp.ne.s32.totalorder %s65, %s68
      %p74 = scmp.eq.s32.totalorder %s13, 0
      %p75 = por %p73, %p74
      %p76 = scmp.ne.s32.totalorder %s65, %s68
      %p77 = scmp.eq.s32.totalorder %s18, 1
      %p78 = por %p76, %p77
      %p79 = scmp.ne.s32.totalorder %s68, %s69
      %p80 = scmp.eq.s32.totalorder %s18, 0
      %p81 = por %p79, %p80
      %p82 = scmp.ne.s32.totalorder %s68, %s69
      %p83 = scmp.eq.s32.totalorder %s19, 1
      %p84 = por %p82, %p83
      %p86 = scmp.ne.s32.totalorder %s69, %s85
      %p87 = scmp.eq.s32.totalorder %s19, 0
      %p88 = por %p86, %p87
      %s90 = sadd.s32 %s89, 1
      %p93 = scmp.eq.s32.totalorder %s13, 1
      %p94 = scmp.ne.s32.totalorder %s89, %s91
      %p95 = scmp.eq.s32.totalorder %s13, 0
      %p96 = por %p94, %p95
      %p97 = scmp.ne.s32.totalorder %s89, %s91
      %p98 = scmp.eq.s32.totalorder %s18, 1
      %p99 = por %p97, %p98
      %p100 = scmp.ne.s32.totalorder %s91, %s92
      %p101 = scmp.eq.s32.totalorder %s18, 0
      %p102 = por %p100, %p101
      %p103 = scmp.ne.s32.totalorder %s91, %s92
      %p104 = scmp.eq.s32.totalorder %s19, 1
      %p105 = por %p103, %p104
      %p107 = scmp.ne.s32.totalorder %s92, %s106
      %p108 = scmp.eq.s32.totalorder %s19, 0
      %p109 = por %p107, %p108
      %s111 = sadd.s32 %s110, 1
      %p114 = scmp.eq.s32.totalorder %s13, 1
      %p115 = scmp.ne.s32.totalorder %s110, %s112
      %p116 = scmp.eq.s32.totalorder %s13, 0
      %p117 = por %p115, %p116
      %p118 = scmp.ne.s32.totalorder %s110, %s112
      %p119 = scmp.eq.s32.totalorder %s18, 1
      %p120 = por %p118, %p119
      %p121 = scmp.ne.s32.totalorder %s112, %s113
      %p122 = scmp.eq.s32.totalorder %s18, 0
      %p123 = por %p121, %p122
      %p124 = scmp.ne.s32.totalorder %s112, %s113
      %p125 = scmp.eq.s32.totalorder %s19, 1
      %p126 = por %p124, %p125
      %p128 = scmp.ne.s32.totalorder %s113, %s127
      %p129 = scmp.eq.s32.totalorder %s19, 0
      %p130 = por %p128, %p129
      %s131 = ssub.s32 %s20, %s32
      %s132 = ssub.s32 %s21, %s28
      %s133 = sor.u32 %s131, %s132
      %p134 = scmp.eq.s32.totalorder %s133, 0
      %s136 = sadd.s32 %s135, 1
      %s137 = scalar_select %p134, %s135, %s136
      %p140 = pneg %p134
      %p141 = scmp.eq.s32.totalorder %s13, 1
      %p142 = por %p140, %p141
      %p143 = scmp.ne.s32.totalorder %s135, %s138
      %p144 = scmp.eq.s32.totalorder %s13, 0
      %p145 = por %p143, %p144
      %p146 = scmp.ne.s32.totalorder %s135, %s138
      %p147 = scmp.eq.s32.totalorder %s18, 1
      %p148 = por %p146, %p147
      %p149 = scmp.ne.s32.totalorder %s138, %s139
      %p150 = scmp.eq.s32.totalorder %s18, 0
      %p151 = por %p149, %p150
      %p152 = scmp.ne.s32.totalorder %s138, %s139
      %p153 = scmp.eq.s32.totalorder %s19, 1
      %p154 = por %p152, %p153
      %p156 = scmp.ne.s32.totalorder %s139, %s155
      %p157 = scmp.eq.s32.totalorder %s19, 0
      %p158 = por %p156, %p157
      %p159 = scmp.le.s32.totalorder 1, %s13
      %p160 = scmp.lt.s32.totalorder %s13, 3
      %p161 = pnand %p159, %p160
      %p162 = pneg %p161
      // Predicated region
      $region9: #{tpu_custom_call.1} parent=5 // pred_check
        _
      $region10: #{tpu_custom_call.1} parent=5 // pred_check_branch
        %164 = sbr.rel (%p161) target = $region12
      $region11: #{tpu_custom_call.1} parent=5 // pred_region
        %s165 = ssub.s32 %s13, 1
        // Predicated region
        $region13: #{tpu_custom_call.1} parent=11 // pred_check
          %p166 = pneg %p102
        $region14: #{tpu_custom_call.1} parent=11 // pred_check_branch
          %168 = sbr.rel (%p166) target = $region16
        $region15: #{tpu_custom_call.1} parent=11 // pred_region
          _
        $region16: #{tpu_custom_call.1} parent=11 // pred_fallthru
          _
        // Predicated region
        $region17: #{tpu_custom_call.1} parent=11 // pred_check
          %p169 = pneg %p123
        $region18: #{tpu_custom_call.1} parent=11 // pred_check_branch
          %171 = sbr.rel (%p169) target = $region20
        $region19: #{tpu_custom_call.1} parent=11 // pred_region
          _
        $region20: #{tpu_custom_call.1} parent=11 // pred_fallthru
          _
      $region12: #{tpu_custom_call.1} parent=5 // pred_fallthru
        _
      %p172 = scmp.lt.s32.totalorder %s13, 2
      // Predicated region
      $region21: #{tpu_custom_call.1} parent=5 // pred_check
        %p173 = pneg %p172
      $region22: #{tpu_custom_call.1} parent=5 // pred_check_branch
        %175 = sbr.rel (%p173) target = $region24
      $region23: #{tpu_custom_call.1} parent=5 // pred_region
        // Predicated region
        $region25: #{tpu_custom_call.1} parent=23 // pred_check
          %p176 = pneg %p47
        $region26: #{tpu_custom_call.1} parent=23 // pred_check_branch
          %178 = sbr.rel (%p176) target = $region28
        $region27: #{tpu_custom_call.1} parent=23 // pred_region
          %p179 = scmp.lt.s32.totalorder %s20, 1
          %s180 = scalar_select %p179, %s20, 1
          %p181 = scmp.lt.s32.totalorder %s21, 0
          %s182 = scalar_select %p181, %s21, 0
          %s183 = sadd.s32 %s182, %s180
          %s184 = smul.addr %s183, 8
          %s185 = scalar_lea.vmem %s0, %s184
        $region28: #{tpu_custom_call.1} parent=23 // pred_fallthru
          _
        // Predicated region
        $region29: #{tpu_custom_call.1} parent=23 // pred_check
          %p186 = pneg %p75
        $region30: #{tpu_custom_call.1} parent=23 // pred_check_branch
          %188 = sbr.rel (%p186) target = $region32
        $region31: #{tpu_custom_call.1} parent=23 // pred_region
          %p189 = scmp.lt.s32.totalorder %s21, 0
          %s190 = scalar_select %p189, %s21, 0
          %p191 = scmp.lt.s32.totalorder %s20, 1
          %s192 = scalar_select %p191, %s20, 1
          %s193 = smul.addr %s190, 2
          %s194 = sadd.s32 %s192, %s193
          %s195 = smul.addr %s194, 8
          %s196 = scalar_lea.vmem %s1, %s195
        $region32: #{tpu_custom_call.1} parent=23 // pred_fallthru
          _
      $region24: #{tpu_custom_call.1} parent=5 // pred_fallthru
        _
      %p197 = scmp.le.s32.totalorder 1, %s13
      %p198 = scmp.lt.s32.totalorder %s13, 3
      %p199 = pnand %p197, %p198
      %p200 = pneg %p199
      // Predicated region
      $region33: #{tpu_custom_call.1} parent=5 // pred_check
        _
      $region34: #{tpu_custom_call.1} parent=5 // pred_check_branch
        %202 = sbr.rel (%p199) target = $region36
      $region35: #{tpu_custom_call.1} parent=5 // pred_region
        %s203 = ssub.s32 %s13, 1
        %p204 = scmp.lt.s32.totalorder %s22, 1
        %s205 = scalar_select %p204, %s22, 1
        %p206 = scmp.lt.s32.totalorder %s23, 0
        %s207 = scalar_select %p206, %s23, 0
        %s208 = sadd.s32 %s207, %s205
        %s209 = smul.addr %s208, 8
        %s210 = scalar_lea.vmem %s0, %s209
        %p211 = pneg %p53
        %p212 = pneg %p50
        %p213 = scmp.lt.s32.totalorder %s23, 0
        %s214 = scalar_select %p213, %s23, 0
        %p215 = scmp.lt.s32.totalorder %s22, 1
        %s216 = scalar_select %p215, %s22, 1
        %s217 = smul.addr %s214, 2
        %s218 = sadd.s32 %s216, %s217
        %s219 = smul.addr %s218, 8
        %s220 = scalar_lea.vmem %s1, %s219
        %p221 = pneg %p81
        %p222 = pneg %p78
        %p223 = pneg %p102
        %p224 = pneg %p99
        %p225 = pneg %p123
        %p226 = pneg %p120
        %p227 = pneg %p151
        %p228 = pneg %p148
        %s229 = sand.u32 %s138, 1
        %s230 = scalar_lea.sflag [#allocation4], %s229
        %s231 = sand.u32 %s138, 1
        %s232 = smul.addr %s231, 8
        %s233 = scalar_lea.vmem [#allocation3], %s232
        %p234 = scmp.lt.s32.totalorder %s22, 1
        %s235 = scalar_select %p234, %s22, 1
        %p236 = scmp.lt.s32.totalorder %s23, 0
        %s237 = scalar_select %p236, %s23, 0
        %s238 = sadd.s32 %s237, %s235
        %s239 = smul.addr %s238, 8
        %s240 = scalar_lea.vmem %s0, %s239
        %p241 = scmp.lt.s32.totalorder %s23, 0
        %s242 = scalar_select %p241, %s23, 0
        %p243 = scmp.lt.s32.totalorder %s22, 1
        %s244 = scalar_select %p243, %s22, 1
        %s245 = smul.addr %s242, 2
        %s246 = sadd.s32 %s244, %s245
        %s247 = smul.addr %s246, 8
        %s248 = scalar_lea.vmem %s1, %s247
        %v249 = vld [vmem:[%s240] sm:$0xff]
        %v250 = vld [vmem:[%s248] sm:$0xff]
        %v251 = vlaneseq
        %v252 = vand.u32 %v251, 127
        %vm253 = vcmp.eq.s32.totalorder %v252, 0
        %254 = vrot.lane.b32.xlu0 %v249, 1
        %v255 = vpop.permute.xlu0 %254
        %257 = vset.pattern.permute.xlu0 0
        %258 = vperm.xlu0 %257, %v250
        %v259 = vpop.permute.xlu0 %258
        %v261 = vsel %vm253, %v259, %v255
        %vm262 = vcmp.eq.s32.totalorder %v252, 127
        %263 = vrot.lane.b32.xlu0 %v249, 127
        %v264 = vpop.permute.xlu0 %263
        %265 = vset.pattern.permute.xlu0 1
        %266 = vperm.xlu0 %265, %v250
        %v267 = vpop.permute.xlu0 %266
        %v269 = vsel %vm262, %v267, %v264
        %270 = vst [vmem:[#allocation2] sm:$0xff] %v261
        %271 = vst [vmem:[#allocation2 + $0x8] sm:$0xff] %v249
        %272 = vst [vmem:[#allocation2 + $0x10] sm:$0xff] %v269
        %v273 = vld [vmem:[%s2] sm:$0xff]
        %v274 = vld [vmem:[#allocation2] sm:$0xff]
        %v275 = vld [vmem:[#allocation2 + $0x8] sm:$0xff]
        %v276 = vld [vmem:[#allocation2 + $0x10] sm:$0xff]
        %v277 = vld [vmem:[%s3] sm:$0xff]
        %279 = vset.pattern.permute.xlu0 0
        %280 = vperm.xlu0 %279, %v277
        %v281 = vpop.permute.xlu0 %280
        %vm283 = vcmask 195584
        %v285 = vsel %vm283, %v273, 0
        %287 = vmatpush.msra.mxu0 0.0
        %288 = vmatpush.msra.mxu0 0.0
        %289 = vmatpush.msra.mxu0 0.0
        %290 = vmatpush.msra.mxu0 0.0
        %291 = vmatpush.msra.mxu0 0.0
        %292 = vmatpush.msra.mxu0 0.0
        %293 = vmatpush.msra.mxu0 0.0
        %294 = vmatpush.msra.mxu0 0.0
        %295 = vmatpush.msra.mxu0 0.0
        %296 = vmatpush.msra.mxu0 0.0
        %297 = vmatpush.msra.mxu0 0.0
        %298 = vmatpush.msra.mxu0 0.0
        %299 = vmatpush.msra.mxu0 0.0
        %v300 = vand.u32 %v276, 4294901760
        %301 = vmatpush.msra.mxu0 %v300
        %v302 = vand.u32 %v275, 4294901760
        %303 = vmatpush.msra.mxu0 %v302
        %v304 = vand.u32 %v274, 4294901760
        %305 = vmatpush.msra.mxu0 %v304
        %v306 = vand.u32 %v285, 4294901760
        %v307 = vsub.f32 %v285, %v306
        %v308 = vand.u32 %v307, 4294901760
        %v309 = vsub.f32 %v307, %v308
        %v310 = vand.u32 %v309, 4294901760
        %311 = vmatmul.f32.gmra.mxu0 %v310
        %v312 = vpop.f32.mrf.mxu0
        %v313 = vadd.f32 %v281, %v312
        %314 = vdwg.mxu0
        %315 = vmatpush.msra.mxu0 0.0
        %316 = vmatpush.msra.mxu0 0.0
        %317 = vmatpush.msra.mxu0 0.0
        %318 = vmatpush.msra.mxu0 0.0
        %319 = vmatpush.msra.mxu0 0.0
        %320 = vmatpush.msra.mxu0 0.0
        %321 = vmatpush.msra.mxu0 0.0
        %322 = vmatpush.msra.mxu0 0.0
        %323 = vmatpush.msra.mxu0 0.0
        %324 = vmatpush.msra.mxu0 0.0
        %325 = vmatpush.msra.mxu0 0.0
        %326 = vmatpush.msra.mxu0 0.0
        %327 = vmatpush.msra.mxu0 0.0
        %v328 = vand.u32 %v276, 4294901760
        %v329 = vsub.f32 %v276, %v328
        %v330 = vand.u32 %v329, 4294901760
        %v331 = vsub.f32 %v329, %v330
        %v332 = vand.u32 %v331, 4294901760
        %333 = vmatpush.msra.mxu0 %v332
        %v334 = vand.u32 %v275, 4294901760
        %v335 = vsub.f32 %v275, %v334
        %v336 = vand.u32 %v335, 4294901760
        %v337 = vsub.f32 %v335, %v336
        %v338 = vand.u32 %v337, 4294901760
        %339 = vmatpush.msra.mxu0 %v338
        %v340 = vand.u32 %v274, 4294901760
        %v341 = vsub.f32 %v274, %v340
        %v342 = vand.u32 %v341, 4294901760
        %v343 = vsub.f32 %v341, %v342
        %v344 = vand.u32 %v343, 4294901760
        %345 = vmatpush.msra.mxu0 %v344
        %v346 = vand.u32 %v285, 4294901760
        %347 = vmatmul.f32.gmra.mxu0 %v346
        %v348 = vpop.f32.mrf.mxu0
        %v349 = vadd.f32 %v313, %v348
        %350 = vdwg.mxu0
        %351 = vmatpush.msra.mxu0 0.0
        %352 = vmatpush.msra.mxu0 0.0
        %353 = vmatpush.msra.mxu0 0.0
        %354 = vmatpush.msra.mxu0 0.0
        %355 = vmatpush.msra.mxu0 0.0
        %356 = vmatpush.msra.mxu0 0.0
        %357 = vmatpush.msra.mxu0 0.0
        %358 = vmatpush.msra.mxu0 0.0
        %359 = vmatpush.msra.mxu0 0.0
        %360 = vmatpush.msra.mxu0 0.0
        %361 = vmatpush.msra.mxu0 0.0
        %362 = vmatpush.msra.mxu0 0.0
        %363 = vmatpush.msra.mxu0 0.0
        %v364 = vand.u32 %v276, 4294901760
        %v365 = vsub.f32 %v276, %v364
        %366 = vmatpush.msra.mxu0 %v365
        %v367 = vand.u32 %v275, 4294901760
        %v368 = vsub.f32 %v275, %v367
        %369 = vmatpush.msra.mxu0 %v368
        %v370 = vand.u32 %v274, 4294901760
        %v371 = vsub.f32 %v274, %v370
        %372 = vmatpush.msra.mxu0 %v371
        %v373 = vand.u32 %v285, 4294901760
        %v374 = vsub.f32 %v285, %v373
        %375 = vmatmul.f32.gmra.mxu0 %v374
        %v376 = vpop.f32.mrf.mxu0
        %v377 = vadd.f32 %v349, %v376
        %378 = vdwg.mxu0
        %379 = vmatpush.msra.mxu0 0.0
        %380 = vmatpush.msra.mxu0 0.0
        %381 = vmatpush.msra.mxu0 0.0
        %382 = vmatpush.msra.mxu0 0.0
        %383 = vmatpush.msra.mxu0 0.0
        %384 = vmatpush.msra.mxu0 0.0
        %385 = vmatpush.msra.mxu0 0.0
        %386 = vmatpush.msra.mxu0 0.0
        %387 = vmatpush.msra.mxu0 0.0
        %388 = vmatpush.msra.mxu0 0.0
        %389 = vmatpush.msra.mxu0 0.0
        %390 = vmatpush.msra.mxu0 0.0
        %391 = vmatpush.msra.mxu0 0.0
        %v392 = vand.u32 %v276, 4294901760
        %393 = vmatpush.msra.mxu0 %v392
        %v394 = vand.u32 %v275, 4294901760
        %395 = vmatpush.msra.mxu0 %v394
        %v396 = vand.u32 %v274, 4294901760
        %397 = vmatpush.msra.mxu0 %v396
        %v398 = vand.u32 %v285, 4294901760
        %v399 = vsub.f32 %v285, %v398
        %v400 = vand.u32 %v399, 4294901760
        %401 = vmatmul.f32.gmra.mxu0 %v400
        %v402 = vpop.f32.mrf.mxu0
        %v403 = vadd.f32 %v377, %v402
        %404 = vdwg.mxu0
        %405 = vmatpush.msra.mxu0 0.0
        %406 = vmatpush.msra.mxu0 0.0
        %407 = vmatpush.msra.mxu0 0.0
        %408 = vmatpush.msra.mxu0 0.0
        %409 = vmatpush.msra.mxu0 0.0
        %410 = vmatpush.msra.mxu0 0.0
        %411 = vmatpush.msra.mxu0 0.0
        %412 = vmatpush.msra.mxu0 0.0
        %413 = vmatpush.msra.mxu0 0.0
        %414 = vmatpush.msra.mxu0 0.0
        %415 = vmatpush.msra.mxu0 0.0
        %416 = vmatpush.msra.mxu0 0.0
        %417 = vmatpush.msra.mxu0 0.0
        %v418 = vand.u32 %v276, 4294901760
        %v419 = vsub.f32 %v276, %v418
        %v420 = vand.u32 %v419, 4294901760
        %421 = vmatpush.msra.mxu0 %v420
        %v422 = vand.u32 %v275, 4294901760
        %v423 = vsub.f32 %v275, %v422
        %v424 = vand.u32 %v423, 4294901760
        %425 = vmatpush.msra.mxu0 %v424
        %v426 = vand.u32 %v274, 4294901760
        %v427 = vsub.f32 %v274, %v426
        %v428 = vand.u32 %v427, 4294901760
        %429 = vmatpush.msra.mxu0 %v428
        %v430 = vand.u32 %v285, 4294901760
        %431 = vmatmul.f32.gmra.mxu0 %v430
        %v432 = vpop.f32.mrf.mxu0
        %v433 = vadd.f32 %v403, %v432
        %434 = vdwg.mxu0
        %435 = vmatpush.msra.mxu0 0.0
        %436 = vmatpush.msra.mxu0 0.0
        %437 = vmatpush.msra.mxu0 0.0
        %438 = vmatpush.msra.mxu0 0.0
        %439 = vmatpush.msra.mxu0 0.0
        %440 = vmatpush.msra.mxu0 0.0
        %441 = vmatpush.msra.mxu0 0.0
        %442 = vmatpush.msra.mxu0 0.0
        %443 = vmatpush.msra.mxu0 0.0
        %444 = vmatpush.msra.mxu0 0.0
        %445 = vmatpush.msra.mxu0 0.0
        %446 = vmatpush.msra.mxu0 0.0
        %447 = vmatpush.msra.mxu0 0.0
        %v448 = vand.u32 %v276, 4294901760
        %449 = vmatpush.msra.mxu0 %v448
        %v450 = vand.u32 %v275, 4294901760
        %451 = vmatpush.msra.mxu0 %v450
        %v452 = vand.u32 %v274, 4294901760
        %453 = vmatpush.msra.mxu0 %v452
        %v454 = vand.u32 %v285, 4294901760
        %455 = vmatmul.f32.gmra.mxu0 %v454
        %v456 = vpop.f32.mrf.mxu0
        %v457 = vadd.f32 %v433, %v456
        %458 = vdwg.mxu0
        %v459 = vmul.f32 %v457, %v457
        %v460 = vrot.slane %v459, 4
        %v461 = vadd.f32 %v459, %v460
        %v462 = vrot.slane %v461, 2
        %v463 = vadd.f32 %v461, %v462
        %v464 = vrot.slane %v463, 1
        %v465 = vadd.f32 %v463, %v464
        %v466 = vmax.f32 %v465, 1e-08
        %v467 = vrsqrt.pop %v466
        %v468 = vmul.f32 %v467, %v466
        %v469 = vmul.f32 %v468, %v467
        %v470 = vmul.f32 0.5, %v469
        %v471 = vsub.f32 1.5, %v470
        %v472 = vmul.f32 %v467, %v471
        %vm473 = vweird.f32 %v466
        %vm474 = vweird.f32 %v467
        %vm475 = vmor %vm473, %vm474
        %v476 = vsel %vm475, %v467, %v472
        %v477 = vmul.f32 %v476, 2.828427
        %v478 = vmul.f32 %v457, %v477
        %v479 = vxor.u32 %v478, 2147483648
        %v480 = vmul.f32 %v479, 1.442695
        %v481 = vpow.pop %v480
        %v482 = vadd.f32 %v481, 1.0
        %v483 = vrcp.pop %v482
        %v484 = vmul.f32 %v482, %v483
        %v485 = vsub.f32 1.0, %v484
        %v486 = vmul.f32 %v483, %v485
        %v487 = vadd.f32 %v483, %v486
        %vm488 = vweird.f32 %v482
        %vm489 = vweird.f32 %v483
        %vm490 = vmor %vm488, %vm489
        %v491 = vsel %vm490, %v483, %v487
        %v492 = vand.u32 2147483647, %v482
        %vm493 = vcmp.eq.f32.partialorder %v492, 8.507059e+37
        %v494 = vand.u32 %v482, 2147483648
        %v495 = vor.u32 1.1754944e-38, %v494
        %v496 = vsel %vm493, %v495, %v491
        %v497 = vmul.f32 1.0, %v496
        %v498 = vmul.f32 %v478, %v497
        %499 = vst [vmem:[%s233] sm:$0xff] %v498
        %s500 = sand.u32 %s138, 1
        %s501 = scalar_lea.sflag [#allocation4], %s500
        %s502 = sand.u32 %s138, 1
        %s503 = smul.addr %s502, 8
        %s504 = scalar_lea.vmem [#allocation3], %s503
        // Predicated region
        $region37: #{tpu_custom_call.1} parent=35 // pred_check
          %p505 = pneg %p148
        $region38: #{tpu_custom_call.1} parent=35 // pred_check_branch
          %507 = sbr.rel (%p505) target = $region40
        $region39: #{tpu_custom_call.1} parent=35 // pred_region
          %509 = vsyncadd %s501, 0
          %s510 = sadd.s32 %s23, %s22
          %s511 = smul.addr %s510, 8
          %s512 = scalar_lea.hbm %s4, %s511
          %s514 = sshll.u32 %s504, 4
          %s515 = int_to_ptr.vmem [resolvable:$true] %s514
          %s516 = sshll.u32 %s512, 4
          %s517 = int_to_ptr.hbm [resolvable:$true] %s516
          %519 = dma.vmem_to_hbm [thread:$0]  %s515, 128, %s517, %s501
        $region40: #{tpu_custom_call.1} parent=35 // pred_fallthru
          _
      $region36: #{tpu_custom_call.1} parent=5 // pred_fallthru
        _
      %p520 = scmp.le.s32.totalorder 2, %s13
      // Predicated region
      $region41: #{tpu_custom_call.1} parent=5 // pred_check
        %p521 = pneg %p520
      $region42: #{tpu_custom_call.1} parent=5 // pred_check_branch
        %523 = sbr.rel (%p521) target = $region44
      $region43: #{tpu_custom_call.1} parent=5 // pred_region
        %s524 = ssub.s32 %s13, 2
        // Predicated region
        $region45: #{tpu_custom_call.1} parent=43 // pred_check
          %p525 = pneg %p154
        $region46: #{tpu_custom_call.1} parent=43 // pred_check_branch
          %527 = sbr.rel (%p525) target = $region48
        $region47: #{tpu_custom_call.1} parent=43 // pred_region
          %s528 = sand.u32 %s139, 1
          %s529 = scalar_lea.sflag [#allocation4], %s528
          %s530 = sand.u32 %s139, 1
          %s531 = smul.addr %s530, 8
          %s532 = scalar_lea.vmem [#allocation3], %s531
          %534 = dma.done %s529, 128
        $region48: #{tpu_custom_call.1} parent=43 // pred_fallthru
          _
      $region44: #{tpu_custom_call.1} parent=5 // pred_fallthru
        _
    $region6: #{tpu_custom_call.1} parent=1 // loop_footer
      %s17 = sadd.s32 1, %s13
    $region7: #{tpu_custom_call.1} parent=1 // loop_footer_branch
      %12 = sbr.rel target = $region3
    $region8: #{tpu_custom_call.1} parent=1 // loop_exit
      _
    %535 = vsyncpa [#allocation4], 1
    %s536 = scalar_lea.sflag [#allocation4], 1
    %537 = vsyncpa %s536, 1

// kernel: tpu_custom_call.1
$region0: #{tpu_custom_call.1}
  #allocation0 [shape = 'u32[]', space=smem, size = 0x4, offset = 0x4, fixed_abs, tag = 'smem constant byte address 0x4 - core index']
  #allocation1 [shape = 'u32[72,128]{1,0:T(1,128)}', space=vmem, size = 0x9000, scoped, tag = 'internal scratch']
  #allocation2 [shape = 'f32[24,128]{1,0:T(8,128)}', space=vmem, size = 0x3000, scoped, tag = 'scratch operand']
  %s0 = inlined_call_operand.vmem [shape: f32[2,8,128], index: 0, kind: input, shape index: {}]
  %s1 = inlined_call_operand.vmem [shape: f32[1,2,8,2], index: 1, kind: input, shape index: {}]
  %s2 = inlined_call_operand.vmem [shape: f32[8,24], index: 2, kind: input, shape index: {}]
  %s3 = inlined_call_operand.vmem [shape: f32[8,1], index: 3, kind: input, shape index: {}]
  %s4 = inlined_call_operand.hbm [shape: f32[2,8,128], index: 4, kind: output, shape index: {}]
  %s5 = sld [smem:[#allocation0]]
  $region49: #{tpu_custom_call.1} parent=0
    _
  %s7 = ssub.s32 1, %s5
  %s8 = scalar_select 0, %s7, %s5
  $region1: #{tpu_custom_call.1} parent=0
    #allocation3 [shape = 'u8[8192]{0}', space=vmem, size = 0x2000, scoped, tag = 'output window, operand 0']
    #allocation4 [shape = 's32[2]{0}', space=sflag, size = 0x8, scoped, tag = 'scoped memory for tpu_custom_call.1']
    %9 = vsyncpa [#allocation4], 0
    %s10 = scalar_lea.sflag [#allocation4], 1
    %11 = vsyncpa %s10, 0
    loop: start=0, step=1, limit=4
    $region2: #{tpu_custom_call.1} parent=1 // loop_pre_header
      _
    $region3: #{tpu_custom_call.1} parent=1 // loop_header
      %s13 = sphi 0, %s17
      %p14 = scmp.ge.s32.totalorder %s13, 4
      %s20 = sphi 0, %s32
      %s21 = sphi 0, %s28
      %s22 = sphi 0, %s20
      %s23 = sphi 0, %s21
      %s24 = sphi 0, %s22
      %s25 = sphi 0, %s23
      %s37 = sphi 0, %s39
      %s40 = sphi 0, %s37
      %s41 = sphi 0, %s40
      %s57 = sphi 0, %s41
      %s65 = sphi 0, %s67
      %s68 = sphi 0, %s65
      %s69 = sphi 0, %s68
      %s85 = sphi 0, %s69
      %s89 = sphi 0, %s89
      %s91 = sphi 0, %s89
      %s92 = sphi 0, %s91
      %s106 = sphi 0, %s92
      %s110 = sphi 0, %s110
      %s112 = sphi 0, %s110
      %s113 = sphi 0, %s112
      %s127 = sphi 0, %s113
      %s135 = sphi 0, %s137
      %s138 = sphi 0, %s135
      %s139 = sphi 0, %s138
      %s155 = sphi 0, %s139
    $region4: #{tpu_custom_call.1} parent=1 // loop_header_branch
      %16 = sbr.rel (%p14) target = $region8
    $region5: #{tpu_custom_call.1} parent=1 // loop_body
      %s18 = ssub.s32 %s13, 1
      %s19 = ssub.s32 %s13, 2
      %s26 = sadd.s32 1, %s21
      %p27 = scmp.ge.s32.totalorder %s26, 1
      %s28 = scalar_select %p27, 0, %s26
      %s29 = sadd.s32 1, %s20
      %s30 = scalar_select %p27, %s29, %s20
      %p31 = scmp.ge.s32.totalorder %s30, 2
      %s32 = scalar_select %p31, 0, %s30
      %s33 = ssub.s32 %s20, %s32
      %s34 = ssub.s32 %s21, %s28
      %s35 = sor.u32 %s33, %s34
      %p36 = scmp.eq.s32.totalorder %s35, 0
      %s38 = sadd.s32 %s37, 1
      %s39 = scalar_select %p36, %s37, %s38
      %p42 = pneg %p36
      %p43 = scmp.eq.s32.totalorder %s13, 1
      %p44 = por %p42, %p43
      %p45 = scmp.ne.s32.totalorder %s37, %s40
      %p46 = scmp.eq.s32.totalorder %s13, 0
      %p47 = por %p45, %p46
      %p48 = scmp.ne.s32.totalorder %s37, %s40
      %p49 = scmp.eq.s32.totalorder %s18, 1
      %p50 = por %p48, %p49
      %p51 = scmp.ne.s32.totalorder %s40, %s41
      %p52 = scmp.eq.s32.totalorder %s18, 0
      %p53 = por %p51, %p52
      %p54 = scmp.ne.s32.totalorder %s40, %s41
      %p55 = scmp.eq.s32.totalorder %s19, 1
      %p56 = por %p54, %p55
      %p58 = scmp.ne.s32.totalorder %s41, %s57
      %p59 = scmp.eq.s32.totalorder %s19, 0
      %p60 = por %p58, %p59
      %s61 = ssub.s32 %s21, %s28
      %s62 = ssub.s32 %s20, %s32
      %s63 = sor.u32 %s61, %s62
      %p64 = scmp.eq.s32.totalorder %s63, 0
      %s66 = sadd.s32 %s65, 1
      %s67 = scalar_select %p64, %s65, %s66
      %p70 = pneg %p64
      %p71 = scmp.eq.s32.totalorder %s13, 1
      %p72 = por %p70, %p71
      %p73 = scmp.ne.s32.totalorder %s65, %s68
      %p74 = scmp.eq.s32.totalorder %s13, 0
      %p75 = por %p73, %p74
      %p76 = scmp.ne.s32.totalorder %s65, %s68
      %p77 = scmp.eq.s32.totalorder %s18, 1
      %p78 = por %p76, %p77
      %p79 = scmp.ne.s32.totalorder %s68, %s69
      %p80 = scmp.eq.s32.totalorder %s18, 0
      %p81 = por %p79, %p80
      %p82 = scmp.ne.s32.totalorder %s68, %s69
      %p83 = scmp.eq.s32.totalorder %s19, 1
      %p84 = por %p82, %p83
      %p86 = scmp.ne.s32.totalorder %s69, %s85
      %p87 = scmp.eq.s32.totalorder %s19, 0
      %p88 = por %p86, %p87
      %s90 = sadd.s32 %s89, 1
      %p93 = scmp.eq.s32.totalorder %s13, 1
      %p94 = scmp.ne.s32.totalorder %s89, %s91
      %p95 = scmp.eq.s32.totalorder %s13, 0
      %p96 = por %p94, %p95
      %p97 = scmp.ne.s32.totalorder %s89, %s91
      %p98 = scmp.eq.s32.totalorder %s18, 1
      %p99 = por %p97, %p98
      %p100 = scmp.ne.s32.totalorder %s91, %s92
      %p101 = scmp.eq.s32.totalorder %s18, 0
      %p102 = por %p100, %p101
      %p103 = scmp.ne.s32.totalorder %s91, %s92
      %p104 = scmp.eq.s32.totalorder %s19, 1
      %p105 = por %p103, %p104
      %p107 = scmp.ne.s32.totalorder %s92, %s106
      %p108 = scmp.eq.s32.totalorder %s19, 0
      %p109 = por %p107, %p108
      %s111 = sadd.s32 %s110, 1
      %p114 = scmp.eq.s32.totalorder %s13, 1
      %p115 = scmp.ne.s32.totalorder %s110, %s112
      %p116 = scmp.eq.s32.totalorder %s13, 0
      %p117 = por %p115, %p116
      %p118 = scmp.ne.s32.totalorder %s110, %s112
      %p119 = scmp.eq.s32.totalorder %s18, 1
      %p120 = por %p118, %p119
      %p121 = scmp.ne.s32.totalorder %s112, %s113
      %p122 = scmp.eq.s32.totalorder %s18, 0
      %p123 = por %p121, %p122
      %p124 = scmp.ne.s32.totalorder %s112, %s113
      %p125 = scmp.eq.s32.totalorder %s19, 1
      %p126 = por %p124, %p125
      %p128 = scmp.ne.s32.totalorder %s113, %s127
      %p129 = scmp.eq.s32.totalorder %s19, 0
      %p130 = por %p128, %p129
      %s131 = ssub.s32 %s20, %s32
      %s132 = ssub.s32 %s21, %s28
      %s133 = sor.u32 %s131, %s132
      %p134 = scmp.eq.s32.totalorder %s133, 0
      %s136 = sadd.s32 %s135, 1
      %s137 = scalar_select %p134, %s135, %s136
      %p140 = pneg %p134
      %p141 = scmp.eq.s32.totalorder %s13, 1
      %p142 = por %p140, %p141
      %p143 = scmp.ne.s32.totalorder %s135, %s138
      %p144 = scmp.eq.s32.totalorder %s13, 0
      %p145 = por %p143, %p144
      %p146 = scmp.ne.s32.totalorder %s135, %s138
      %p147 = scmp.eq.s32.totalorder %s18, 1
      %p148 = por %p146, %p147
      %p149 = scmp.ne.s32.totalorder %s138, %s139
      %p150 = scmp.eq.s32.totalorder %s18, 0
      %p151 = por %p149, %p150
      %p152 = scmp.ne.s32.totalorder %s138, %s139
      %p153 = scmp.eq.s32.totalorder %s19, 1
      %p154 = por %p152, %p153
      %p156 = scmp.ne.s32.totalorder %s139, %s155
      %p157 = scmp.eq.s32.totalorder %s19, 0
      %p158 = por %p156, %p157
      %p159 = scmp.le.s32.totalorder 1, %s13
      %p160 = scmp.lt.s32.totalorder %s13, 3
      %p161 = pnand %p159, %p160
      %p162 = pneg %p161
      // Predicated region
      $region9: #{tpu_custom_call.1} parent=5 // pred_check
        _
      $region10: #{tpu_custom_call.1} parent=5 // pred_check_branch
        %164 = sbr.rel (%p161) target = $region12
      $region11: #{tpu_custom_call.1} parent=5 // pred_region
        %s165 = ssub.s32 %s13, 1
        // Predicated region
        $region13: #{tpu_custom_call.1} parent=11 // pred_check
          %p166 = pneg %p102
        $region14: #{tpu_custom_call.1} parent=11 // pred_check_branch
          %168 = sbr.rel (%p166) target = $region16
        $region15: #{tpu_custom_call.1} parent=11 // pred_region
          _
        $region16: #{tpu_custom_call.1} parent=11 // pred_fallthru
          _
        // Predicated region
        $region17: #{tpu_custom_call.1} parent=11 // pred_check
          %p169 = pneg %p123
        $region18: #{tpu_custom_call.1} parent=11 // pred_check_branch
          %171 = sbr.rel (%p169) target = $region20
        $region19: #{tpu_custom_call.1} parent=11 // pred_region
          _
        $region20: #{tpu_custom_call.1} parent=11 // pred_fallthru
          _
      $region12: #{tpu_custom_call.1} parent=5 // pred_fallthru
        _
      %p172 = scmp.lt.s32.totalorder %s13, 2
      // Predicated region
      $region21: #{tpu_custom_call.1} parent=5 // pred_check
        %p173 = pneg %p172
      $region22: #{tpu_custom_call.1} parent=5 // pred_check_branch
        %175 = sbr.rel (%p173) target = $region24
      $region23: #{tpu_custom_call.1} parent=5 // pred_region
        // Predicated region
        $region25: #{tpu_custom_call.1} parent=23 // pred_check
          %p176 = pneg %p47
        $region26: #{tpu_custom_call.1} parent=23 // pred_check_branch
          %178 = sbr.rel (%p176) target = $region28
        $region27: #{tpu_custom_call.1} parent=23 // pred_region
          %p179 = scmp.lt.s32.totalorder %s20, 1
          %s180 = scalar_select %p179, %s20, 1
          %p181 = scmp.lt.s32.totalorder %s21, 0
          %s182 = scalar_select %p181, %s21, 0
          %s183 = sadd.s32 %s182, %s180
          %s184 = smul.addr %s183, 8
          %s185 = scalar_lea.vmem %s0, %s184
        $region28: #{tpu_custom_call.1} parent=23 // pred_fallthru
          _
        // Predicated region
        $region29: #{tpu_custom_call.1} parent=23 // pred_check
          %p186 = pneg %p75
        $region30: #{tpu_custom_call.1} parent=23 // pred_check_branch
          %188 = sbr.rel (%p186) target = $region32
        $region31: #{tpu_custom_call.1} parent=23 // pred_region
          %p189 = scmp.lt.s32.totalorder %s21, 0
          %s190 = scalar_select %p189, %s21, 0
          %p191 = scmp.lt.s32.totalorder %s20, 1
          %s192 = scalar_select %p191, %s20, 1
          %s193 = smul.addr %s190, 2
          %s194 = sadd.s32 %s192, %s193
          %s195 = smul.addr %s194, 8
          %s196 = scalar_lea.vmem %s1, %s195
        $region32: #{tpu_custom_call.1} parent=23 // pred_fallthru
          _
      $region24: #{tpu_custom_call.1} parent=5 // pred_fallthru
        _
      %p197 = scmp.le.s32.totalorder 1, %s13
      %p198 = scmp.lt.s32.totalorder %s13, 3
      %p199 = pnand %p197, %p198
      %p200 = pneg %p199
      // Predicated region
      $region33: #{tpu_custom_call.1} parent=5 // pred_check
        _
      $region34: #{tpu_custom_call.1} parent=5 // pred_check_branch
        %202 = sbr.rel (%p199) target = $region36
      $region35: #{tpu_custom_call.1} parent=5 // pred_region
        %s203 = ssub.s32 %s13, 1
        %p204 = scmp.lt.s32.totalorder %s22, 1
        %s205 = scalar_select %p204, %s22, 1
        %p206 = scmp.lt.s32.totalorder %s23, 0
        %s207 = scalar_select %p206, %s23, 0
        %s208 = sadd.s32 %s207, %s205
        %s209 = smul.addr %s208, 8
        %s210 = scalar_lea.vmem %s0, %s209
        %p211 = pneg %p53
        %p212 = pneg %p50
        %p213 = scmp.lt.s32.totalorder %s23, 0
        %s214 = scalar_select %p213, %s23, 0
        %p215 = scmp.lt.s32.totalorder %s22, 1
        %s216 = scalar_select %p215, %s22, 1
        %s217 = smul.addr %s214, 2
        %s218 = sadd.s32 %s216, %s217
        %s219 = smul.addr %s218, 8
        %s220 = scalar_lea.vmem %s1, %s219
        %p221 = pneg %p81
        %p222 = pneg %p78
        %p223 = pneg %p102
        %p224 = pneg %p99
        %p225 = pneg %p123
        %p226 = pneg %p120
        %p227 = pneg %p151
        %p228 = pneg %p148
        %s229 = sand.u32 %s138, 1
        %s230 = scalar_lea.sflag [#allocation4], %s229
        %s231 = sand.u32 %s138, 1
        %s232 = smul.addr %s231, 8
        %s233 = scalar_lea.vmem [#allocation3], %s232
        %p234 = scmp.lt.s32.totalorder %s22, 1
        %s235 = scalar_select %p234, %s22, 1
        %p236 = scmp.lt.s32.totalorder %s23, 0
        %s237 = scalar_select %p236, %s23, 0
        %s238 = sadd.s32 %s237, %s235
        %s239 = smul.addr %s238, 8
        %s240 = scalar_lea.vmem %s0, %s239
        %p241 = scmp.lt.s32.totalorder %s23, 0
        %s242 = scalar_select %p241, %s23, 0
        %p243 = scmp.lt.s32.totalorder %s22, 1
        %s244 = scalar_select %p243, %s22, 1
        %s245 = smul.addr %s242, 2
        %s246 = sadd.s32 %s244, %s245
        %s247 = smul.addr %s246, 8
        %s248 = scalar_lea.vmem %s1, %s247
        %v249 = vld [vmem:[%s240] sm:$0xff]
        %v250 = vld [vmem:[%s248] sm:$0xff]
        %v251 = vlaneseq
        %v252 = vand.u32 %v251, 127
        %vm253 = vcmp.eq.s32.totalorder %v252, 0
        %254 = vrot.lane.b32.xlu0 %v249, 1
        %v255 = vpop.permute.xlu0 %254
        %257 = vset.pattern.permute.xlu0 0
        %258 = vperm.xlu0 %257, %v250
        %v259 = vpop.permute.xlu0 %258
        %v261 = vsel %vm253, %v259, %v255
        %vm262 = vcmp.eq.s32.totalorder %v252, 127
        %263 = vrot.lane.b32.xlu0 %v249, 127
        %v264 = vpop.permute.xlu0 %263
        %265 = vset.pattern.permute.xlu0 1
        %266 = vperm.xlu0 %265, %v250
        %v267 = vpop.permute.xlu0 %266
        %v269 = vsel %vm262, %v267, %v264
        %270 = vst [vmem:[#allocation2] sm:$0xff] %v261
        %271 = vst [vmem:[#allocation2 + $0x8] sm:$0xff] %v249
        %272 = vst [vmem:[#allocation2 + $0x10] sm:$0xff] %v269
        %v273 = vld [vmem:[%s2] sm:$0xff]
        %v274 = vld [vmem:[#allocation2] sm:$0xff]
        %v275 = vld [vmem:[#allocation2 + $0x8] sm:$0xff]
        %v276 = vld [vmem:[#allocation2 + $0x10] sm:$0xff]
        %v277 = vld [vmem:[%s3] sm:$0xff]
        %279 = vset.pattern.permute.xlu0 0
        %280 = vperm.xlu0 %279, %v277
        %v281 = vpop.permute.xlu0 %280
        %vm283 = vcmask 195584
        %v285 = vsel %vm283, %v273, 0
        %287 = vmatpush.msra.mxu0 0.0
        %288 = vmatpush.msra.mxu0 0.0
        %289 = vmatpush.msra.mxu0 0.0
        %290 = vmatpush.msra.mxu0 0.0
        %291 = vmatpush.msra.mxu0 0.0
        %292 = vmatpush.msra.mxu0 0.0
        %293 = vmatpush.msra.mxu0 0.0
        %294 = vmatpush.msra.mxu0 0.0
        %295 = vmatpush.msra.mxu0 0.0
        %296 = vmatpush.msra.mxu0 0.0
        %297 = vmatpush.msra.mxu0 0.0
        %298 = vmatpush.msra.mxu0 0.0
        %299 = vmatpush.msra.mxu0 0.0
        %v300 = vand.u32 %v276, 4294901760
        %301 = vmatpush.msra.mxu0 %v300
        %v302 = vand.u32 %v275, 4294901760
        %303 = vmatpush.msra.mxu0 %v302
        %v304 = vand.u32 %v274, 4294901760
        %305 = vmatpush.msra.mxu0 %v304
        %v306 = vand.u32 %v285, 4294901760
        %v307 = vsub.f32 %v285, %v306
        %v308 = vand.u32 %v307, 4294901760
        %v309 = vsub.f32 %v307, %v308
        %v310 = vand.u32 %v309, 4294901760
        %311 = vmatmul.f32.gmra.mxu0 %v310
        %v312 = vpop.f32.mrf.mxu0
        %v313 = vadd.f32 %v281, %v312
        %314 = vdwg.mxu0
        %315 = vmatpush.msra.mxu0 0.0
        %316 = vmatpush.msra.mxu0 0.0
        %317 = vmatpush.msra.mxu0 0.0
        %318 = vmatpush.msra.mxu0 0.0
        %319 = vmatpush.msra.mxu0 0.0
        %320 = vmatpush.msra.mxu0 0.0
        %321 = vmatpush.msra.mxu0 0.0
        %322 = vmatpush.msra.mxu0 0.0
        %323 = vmatpush.msra.mxu0 0.0
        %324 = vmatpush.msra.mxu0 0.0
        %325 = vmatpush.msra.mxu0 0.0
        %326 = vmatpush.msra.mxu0 0.0
        %327 = vmatpush.msra.mxu0 0.0
        %v328 = vand.u32 %v276, 4294901760
        %v329 = vsub.f32 %v276, %v328
        %v330 = vand.u32 %v329, 4294901760
        %v331 = vsub.f32 %v329, %v330
        %v332 = vand.u32 %v331, 4294901760
        %333 = vmatpush.msra.mxu0 %v332
        %v334 = vand.u32 %v275, 4294901760
        %v335 = vsub.f32 %v275, %v334
        %v336 = vand.u32 %v335, 4294901760
        %v337 = vsub.f32 %v335, %v336
        %v338 = vand.u32 %v337, 4294901760
        %339 = vmatpush.msra.mxu0 %v338
        %v340 = vand.u32 %v274, 4294901760
        %v341 = vsub.f32 %v274, %v340
        %v342 = vand.u32 %v341, 4294901760
        %v343 = vsub.f32 %v341, %v342
        %v344 = vand.u32 %v343, 4294901760
        %345 = vmatpush.msra.mxu0 %v344
        %v346 = vand.u32 %v285, 4294901760
        %347 = vmatmul.f32.gmra.mxu0 %v346
        %v348 = vpop.f32.mrf.mxu0
        %v349 = vadd.f32 %v313, %v348
        %350 = vdwg.mxu0
        %351 = vmatpush.msra.mxu0 0.0
        %352 = vmatpush.msra.mxu0 0.0
        %353 = vmatpush.msra.mxu0 0.0
        %354 = vmatpush.msra.mxu0 0.0
        %355 = vmatpush.msra.mxu0 0.0
        %356 = vmatpush.msra.mxu0 0.0
        %357 = vmatpush.msra.mxu0 0.0
        %358 = vmatpush.msra.mxu0 0.0
        %359 = vmatpush.msra.mxu0 0.0
        %360 = vmatpush.msra.mxu0 0.0
        %361 = vmatpush.msra.mxu0 0.0
        %362 = vmatpush.msra.mxu0 0.0
        %363 = vmatpush.msra.mxu0 0.0
        %v364 = vand.u32 %v276, 4294901760
        %v365 = vsub.f32 %v276, %v364
        %366 = vmatpush.msra.mxu0 %v365
        %v367 = vand.u32 %v275, 4294901760
        %v368 = vsub.f32 %v275, %v367
        %369 = vmatpush.msra.mxu0 %v368
        %v370 = vand.u32 %v274, 4294901760
        %v371 = vsub.f32 %v274, %v370
        %372 = vmatpush.msra.mxu0 %v371
        %v373 = vand.u32 %v285, 4294901760
        %v374 = vsub.f32 %v285, %v373
        %375 = vmatmul.f32.gmra.mxu0 %v374
        %v376 = vpop.f32.mrf.mxu0
        %v377 = vadd.f32 %v349, %v376
        %378 = vdwg.mxu0
        %379 = vmatpush.msra.mxu0 0.0
        %380 = vmatpush.msra.mxu0 0.0
        %381 = vmatpush.msra.mxu0 0.0
        %382 = vmatpush.msra.mxu0 0.0
        %383 = vmatpush.msra.mxu0 0.0
        %384 = vmatpush.msra.mxu0 0.0
        %385 = vmatpush.msra.mxu0 0.0
        %386 = vmatpush.msra.mxu0 0.0
        %387 = vmatpush.msra.mxu0 0.0
        %388 = vmatpush.msra.mxu0 0.0
        %389 = vmatpush.msra.mxu0 0.0
        %390 = vmatpush.msra.mxu0 0.0
        %391 = vmatpush.msra.mxu0 0.0
        %v392 = vand.u32 %v276, 4294901760
        %393 = vmatpush.msra.mxu0 %v392
        %v394 = vand.u32 %v275, 4294901760
        %395 = vmatpush.msra.mxu0 %v394
        %v396 = vand.u32 %v274, 4294901760
        %397 = vmatpush.msra.mxu0 %v396
        %v398 = vand.u32 %v285, 4294901760
        %v399 = vsub.f32 %v285, %v398
        %v400 = vand.u32 %v399, 4294901760
        %401 = vmatmul.f32.gmra.mxu0 %v400
        %v402 = vpop.f32.mrf.mxu0
        %v403 = vadd.f32 %v377, %v402
        %404 = vdwg.mxu0
        %405 = vmatpush.msra.mxu0 0.0
        %406 = vmatpush.msra.mxu0 0.0
        %407 = vmatpush.msra.mxu0 0.0
        %408 = vmatpush.msra.mxu0 0.0
        %409 = vmatpush.msra.mxu0 0.0
        %410 = vmatpush.msra.mxu0 0.0
        %411 = vmatpush.msra.mxu0 0.0
        %412 = vmatpush.msra.mxu0 0.0
        %413 = vmatpush.msra.mxu0 0.0
        %414 = vmatpush.msra.mxu0 0.0
        %415 = vmatpush.msra.mxu0 0.0
        %416 = vmatpush.msra.mxu0 0.0
        %417 = vmatpush.msra.mxu0 0.0
        %v418 = vand.u32 %v276, 4294901760
        %v419 = vsub.f32 %v276, %v418
        %v420 = vand.u32 %v419, 4294901760
        %421 = vmatpush.msra.mxu0 %v420
        %v422 = vand.u32 %v275, 4294901760
        %v423 = vsub.f32 %v275, %v422
        %v424 = vand.u32 %v423, 4294901760
        %425 = vmatpush.msra.mxu0 %v424
        %v426 = vand.u32 %v274, 4294901760
        %v427 = vsub.f32 %v274, %v426
        %v428 = vand.u32 %v427, 4294901760
        %429 = vmatpush.msra.mxu0 %v428
        %v430 = vand.u32 %v285, 4294901760
        %431 = vmatmul.f32.gmra.mxu0 %v430
        %v432 = vpop.f32.mrf.mxu0
        %v433 = vadd.f32 %v403, %v432
        %434 = vdwg.mxu0
        %435 = vmatpush.msra.mxu0 0.0
        %436 = vmatpush.msra.mxu0 0.0
        %437 = vmatpush.msra.mxu0 0.0
        %438 = vmatpush.msra.mxu0 0.0
        %439 = vmatpush.msra.mxu0 0.0
        %440 = vmatpush.msra.mxu0 0.0
        %441 = vmatpush.msra.mxu0 0.0
        %442 = vmatpush.msra.mxu0 0.0
        %443 = vmatpush.msra.mxu0 0.0
        %444 = vmatpush.msra.mxu0 0.0
        %445 = vmatpush.msra.mxu0 0.0
        %446 = vmatpush.msra.mxu0 0.0
        %447 = vmatpush.msra.mxu0 0.0
        %v448 = vand.u32 %v276, 4294901760
        %449 = vmatpush.msra.mxu0 %v448
        %v450 = vand.u32 %v275, 4294901760
        %451 = vmatpush.msra.mxu0 %v450
        %v452 = vand.u32 %v274, 4294901760
        %453 = vmatpush.msra.mxu0 %v452
        %v454 = vand.u32 %v285, 4294901760
        %455 = vmatmul.f32.gmra.mxu0 %v454
        %v456 = vpop.f32.mrf.mxu0
        %v457 = vadd.f32 %v433, %v456
        %458 = vdwg.mxu0
        %v459 = vmul.f32 %v457, %v457
        %v460 = vrot.slane %v459, 4
        %v461 = vadd.f32 %v459, %v460
        %v462 = vrot.slane %v461, 2
        %v463 = vadd.f32 %v461, %v462
        %v464 = vrot.slane %v463, 1
        %v465 = vadd.f32 %v463, %v464
        %v466 = vmax.f32 %v465, 1e-08
        %v467 = vrsqrt.pop %v466
        %v468 = vmul.f32 %v467, %v466
        %v469 = vmul.f32 %v468, %v467
        %v470 = vmul.f32 0.5, %v469
        %v471 = vsub.f32 1.5, %v470
        %v472 = vmul.f32 %v467, %v471
        %vm473 = vweird.f32 %v466
        %vm474 = vweird.f32 %v467
        %vm475 = vmor %vm473, %vm474
        %v476 = vsel %vm475, %v467, %v472
        %v477 = vmul.f32 %v476, 2.828427
        %v478 = vmul.f32 %v457, %v477
        %v479 = vxor.u32 %v478, 2147483648
        %v480 = vmul.f32 %v479, 1.442695
        %v481 = vpow.pop %v480
        %v482 = vadd.f32 %v481, 1.0
        %v483 = vrcp.pop %v482
        %v484 = vmul.f32 %v482, %v483
        %v485 = vsub.f32 1.0, %v484
        %v486 = vmul.f32 %v483, %v485
        %v487 = vadd.f32 %v483, %v486
        %vm488 = vweird.f32 %v482
        %vm489 = vweird.f32 %v483
        %vm490 = vmor %vm488, %vm489
        %v491 = vsel %vm490, %v483, %v487
        %v492 = vand.u32 2147483647, %v482
        %vm493 = vcmp.eq.f32.partialorder %v492, 8.507059e+37
        %v494 = vand.u32 %v482, 2147483648
        %v495 = vor.u32 1.1754944e-38, %v494
        %v496 = vsel %vm493, %v495, %v491
        %v497 = vmul.f32 1.0, %v496
        %v498 = vmul.f32 %v478, %v497
        %499 = vst [vmem:[%s233] sm:$0xff] %v498
        %s500 = sand.u32 %s138, 1
        %s501 = scalar_lea.sflag [#allocation4], %s500
        %s502 = sand.u32 %s138, 1
        %s503 = smul.addr %s502, 8
        %s504 = scalar_lea.vmem [#allocation3], %s503
        // Predicated region
        $region37: #{tpu_custom_call.1} parent=35 // pred_check
          %p505 = pneg %p148
        $region38: #{tpu_custom_call.1} parent=35 // pred_check_branch
          %507 = sbr.rel (%p505) target = $region40
        $region39: #{tpu_custom_call.1} parent=35 // pred_region
          %509 = vsyncadd %s501, 0
          %s510 = sadd.s32 %s23, %s22
          %s511 = smul.addr %s510, 8
          %s512 = scalar_lea.hbm %s4, %s511
          %s514 = sshll.u32 %s504, 4
          %s515 = int_to_ptr.vmem [resolvable:$true] %s514
          %s516 = sshll.u32 %s512, 4
          %s517 = int_to_ptr.hbm [resolvable:$true] %s516
          %519 = dma.vmem_to_hbm [thread:$0]  %s515, 128, %s517, %s501
        $region40: #{tpu_custom_call.1} parent=35 // pred_fallthru
          _
      $region36: #{tpu_custom_call.1} parent=5 // pred_fallthru
        _
      %p520 = scmp.le.s32.totalorder 2, %s13
      // Predicated region
      $region41: #{tpu_custom_call.1} parent=5 // pred_check
        %p521 = pneg %p520
      $region42: #{tpu_custom_call.1} parent=5 // pred_check_branch
        %523 = sbr.rel (%p521) target = $region44
      $region43: #{tpu_custom_call.1} parent=5 // pred_region
        %s524 = ssub.s32 %s13, 2
        // Predicated region
        $region45: #{tpu_custom_call.1} parent=43 // pred_check
          %p525 = pneg %p154
        $region46: #{tpu_custom_call.1} parent=43 // pred_check_branch
          %527 = sbr.rel (%p525) target = $region48
        $region47: #{tpu_custom_call.1} parent=43 // pred_region
          %s528 = sand.u32 %s139, 1
          %s529 = scalar_lea.sflag [#allocation4], %s528
          %s530 = sand.u32 %s139, 1
          %s531 = smul.addr %s530, 8
          %s532 = scalar_lea.vmem [#allocation3], %s531
          %534 = dma.done %s529, 128
        $region48: #{tpu_custom_call.1} parent=43 // pred_fallthru
          _
      $region44: #{tpu_custom_call.1} parent=5 // pred_fallthru
        _
    $region6: #{tpu_custom_call.1} parent=1 // loop_footer
      %s17 = sadd.s32 1, %s13
    $region7: #{tpu_custom_call.1} parent=1 // loop_footer_branch
      %12 = sbr.rel target = $region3
    $region8: #{tpu_custom_call.1} parent=1 // loop_exit
      _
    %535 = vsyncpa [#allocation4], 1
    %s536 = scalar_lea.sflag [#allocation4], 1
    %537 = vsyncpa %s536, 1

</llo_original>
